<compile_context>
chip_gen: v6e
topology: v6e:2x2x1
jax: 0.10.0
libtpu: 0.0.40
codegen_flags: <defaults>
</compile_context>

<pallas_src>
import functools

import jax
import jax.numpy as jnp
from jax.experimental import pallas as pl
from jax.experimental.pallas import tpu as pltpu


def _cnn_encoder_gn_kernel(im_ref, w_ref, gb_ref, o_ref, *,
                           num_groups, eps, neg_slope):
    # im_ref: (B, K_pad, HW)  bf16 transposed im2col for B images (pixels on lanes)
    # w_ref:  (Cout, K_pad)   bf16 conv weights (rows = out channels, tap-major/cin-minor cols)
    # gb_ref: (2, Cout, 1)    f32 [gamma; beta]
    # o_ref:  (B, Cout, HW)
    B = im_ref.shape[0]
    Cout = o_ref.shape[1]
    HW = o_ref.shape[2]
    G = num_groups
    cpg = Cout // G
    inv_n = 1.0 / float(cpg * HW)

    # Hoisted loop-invariants (weights / affine params stay resident across the B images).
    w = w_ref[...]
    gamma = gb_ref[0].astype(jnp.float32)   # (Cout, 1)
    beta = gb_ref[1].astype(jnp.float32)    # (Cout, 1)

    # Static unroll over the images in this block (B is a small compile-time constant):
    # one fused MXU matmul + per-image GroupNorm stats each, no relayout of the accumulator.
    for b in range(B):
        # 3x3 conv as ONE matmul: (Cout, K_pad) @ (K_pad, HW) -> (Cout, HW), f32 accumulate.
        acc = jnp.dot(w, im_ref[b], preferred_element_type=jnp.float32)

        # GroupNorm(G) statistics: per-channel lane reductions (XLU), then fold channels into
        # groups on tiny (G, cpg, 1) arrays. The big (Cout, HW) accumulator is never moved.
        ch_sum = jnp.sum(acc, axis=1, keepdims=True)                         # (Cout, 1)
        ch_sq = jnp.sum(acc * acc, axis=1, keepdims=True)                    # (Cout, 1)
        grp_sum = jnp.sum(ch_sum.reshape(G, cpg, 1), axis=1, keepdims=True)  # (G, 1, 1)
        grp_sq = jnp.sum(ch_sq.reshape(G, cpg, 1), axis=1, keepdims=True)    # (G, 1, 1)
        mean_g = grp_sum * inv_n
        # single-pass E[x^2] - mean^2 can go slightly negative from cancellation -> clamp
        var_g = jnp.maximum(grp_sq * inv_n - mean_g * mean_g, 0.0)
        inv_g = jax.lax.rsqrt(var_g + eps)

        # Broadcast group stats back per-channel; fold normalize + affine into scale/shift.
        mean_c = jnp.broadcast_to(mean_g, (G, cpg, 1)).reshape(Cout, 1)
        inv_c = jnp.broadcast_to(inv_g, (G, cpg, 1)).reshape(Cout, 1)
        scale_c = inv_c * gamma                                              # (Cout, 1)
        shift_c = beta - mean_c * scale_c                                    # (Cout, 1)

        y = acc * scale_c + shift_c                  # per-channel scalar broadcast (VPU)
        y = jnp.where(y >= 0, y, neg_slope * y)      # LeakyReLU(0.01)

        o_ref[b] = y.astype(o_ref.dtype)             # lane-dense store (HW is the full dim)


def _choose_batch_block(n, max_block=16):
    """Largest divisor B of n with n // B >= 2 (keeps the grid >= 2 steps for v7x's
    two TensorCores) and B <= max_block (bounds per-step VMEM)."""
    if n <= 1:
        return max(n, 1)
    best = 1
    for b in range(1, min(n // 2, max_block) + 1):
        if n % b == 0:
            best = b
    return best


def cnn_encoder_gn(x_nchw, w_oihw, gamma, beta, *, num_groups=16, eps=1e-6, neg_slope=0.01):
    """Forward of CNNencoder_gn. x_nchw: (N, Cin, H, W). Returns (N, Cout, H, W)."""
    N, Cin, H, W = x_nchw.shape
    Cout = w_oihw.shape[0]
    assert Cout % num_groups == 0
    HW = H * W
    K = 9 * Cin
    # Pad K to a multiple of the bf16 sublane pack (16) so the RHS sublane tiling is clean.
    K_pad = ((K + 15) // 16) * 16

    B = _choose_batch_block(N)
    grid_n = N // B

    # Zero-pad (conv padding=1) and build the transposed im2col (N, 9*Cin, H*W).
    # Rows are tap-major / cin-minor; columns are pixels (the lane axis).
    # Cast to bf16 first: bf16 MXU operands, f32 accumulation inside the kernel.
    # TODO(synk): for large Cin / H*W, build im2col in-kernel from a DMA'd padded image block
    # instead of materializing the 9x-expanded im2col in HBM (v5e bandwidth scaling item).
    x_pad = jnp.pad(x_nchw, ((0, 0), (0, 0), (1, 1), (1, 1))).astype(jnp.bfloat16)
    taps = [x_pad[:, :, dy:dy + H, dx:dx + W].reshape(N, Cin, HW)
            for dy in range(3) for dx in range(3)]
    im2col_t = jnp.concatenate(taps, axis=1)                           # (N, K, HW) bf16
    im2col_t = jnp.pad(im2col_t, ((0, 0), (0, K_pad - K), (0, 0)))     # (N, K_pad, HW)

    # (Cout, Cin, 3, 3) -> (Cout, ky, kx, Cin) -> (Cout, K_pad): matches tap-major im2col rows.
    w2 = jnp.transpose(w_oihw, (0, 2, 3, 1)).reshape(Cout, K)
    w2 = jnp.pad(w2, ((0, 0), (0, K_pad - K))).astype(jnp.bfloat16)

    # Pack gamma/beta into one resident input: halves the tiny per-call DMAs/double-buffers.
    gb = jnp.stack([gamma, beta], axis=0).reshape(2, Cout, 1).astype(jnp.float32)

    kernel = functools.partial(_cnn_encoder_gn_kernel,
                               num_groups=num_groups, eps=eps, neg_slope=neg_slope)

    # TODO(synk): for very large H*W, tile the pixel axis with a second grid dimension and a
    # two-pass GroupNorm; size those blocks against v7x's 64 MiB VMEM (<= ~48 MiB incl.
    # double buffers) while keeping lane tiles >= 512.
    out = pl.pallas_call(
        kernel,
        out_shape=jax.ShapeDtypeStruct((N, Cout, HW), x_nchw.dtype),
        grid_spec=pltpu.PrefetchScalarGridSpec(
            num_scalar_prefetch=0,
            grid=(grid_n,),
            in_specs=[
                pl.BlockSpec((B, K_pad, HW), lambda n: (n, 0, 0)),     # B images' im2col^T
                pl.BlockSpec((Cout, K_pad), lambda n: (0, 0)),         # weights (resident)
                pl.BlockSpec((2, Cout, 1), lambda n: (0, 0, 0)),       # gamma+beta (resident)
            ],
            out_specs=pl.BlockSpec((B, Cout, HW), lambda n: (n, 0, 0)),
        ),
        compiler_params=pltpu.CompilerParams(
            dimension_semantics=("parallel",),
            vmem_limit_bytes=32 * 1024 * 1024,
        ),
    )(im2col_t, w2, gb)

    # (N, Cout, H*W) is already channel-major: free metadata reshape back to NCHW.
    return out.reshape(N, Cout, H, W)


def _reference_forward(x_nchw, w_oihw, gamma, beta, *, num_groups=16, eps=1e-6,
                       neg_slope=0.01, match_bf16=True):
    # Reference for the module's forward. With match_bf16=True the conv operands are rounded
    # to bf16 (still f32 accumulation) to match the kernel's MXU precision.
    if match_bf16:
        x_nchw = x_nchw.astype(jnp.bfloat16).astype(jnp.float32)
        w_oihw = w_oihw.astype(jnp.bfloat16).astype(jnp.float32)
    y = jax.lax.conv_general_dilated(
        x_nchw, w_oihw, window_strides=(1, 1), padding=((1, 1), (1, 1)),
        dimension_numbers=("NCHW", "OIHW", "NCHW"))
    N, C, H, W = y.shape
    yg = y.reshape(N, num_groups, C // num_groups, H, W)
    mean = yg.mean(axis=(2, 3, 4), keepdims=True)
    var = ((yg - mean) ** 2).mean(axis=(2, 3, 4), keepdims=True)
    yn = ((yg - mean) / jnp.sqrt(var + eps)).reshape(N, C, H, W)
    yn = yn * gamma[None, :, None, None] + beta[None, :, None, None]
    return jnp.where(yn >= 0, yn, neg_slope * yn)


if __name__ == "__main__":
    # Small shapes consistent with the module: out_c must be divisible by 16 (GroupNorm groups).
    N, IN_C, OUT_C, H, W = 2, 4, 32, 16, 16

    key = jax.random.PRNGKey(0)
    kx, kw, kg, kb = jax.random.split(key, 4)

    x = jax.random.normal(kx, (N, IN_C, H, W), dtype=jnp.float32)
    # Conv2d weight shape in PyTorch: (out_c, in_c, 3, 3)
    w = jax.random.normal(kw, (OUT_C, IN_C, 3, 3), dtype=jnp.float32) * 0.1
    # GroupNorm affine params (PyTorch inits gamma=1, beta=0; random here to exercise affine)
    gamma = 1.0 + 0.1 * jax.random.normal(kg, (OUT_C,), dtype=jnp.float32)
    beta = 0.1 * jax.random.normal(kb, (OUT_C,), dtype=jnp.float32)

    out = cnn_encoder_gn(x, w, gamma, beta)
    out = jax.block_until_ready(out)

    # Compare against a precision-matched reference (bf16 conv operands, f32 accumulation).
    ref = _reference_forward(x, w, gamma, beta, match_bf16=True)
    assert out.shape == (N, OUT_C, H, W)
    err = float(jnp.max(jnp.abs(out - ref)))
    assert jnp.allclose(out, ref, rtol=2e-2, atol=2e-2), err

    print("KERNEL_OK")
</pallas_src>

<mosaic_0001>
module attributes {stable_mosaic.version = 11 : i64} {
  func.func @_cnn_encoder_gn_kernel(%arg0: i32, %arg1: memref<1x48x256xbf16, #tpu.memory_space<vmem>>, %arg2: memref<32x48xbf16, #tpu.memory_space<vmem>>, %arg3: memref<2x32x1xf32, #tpu.memory_space<vmem>>, %arg4: memref<1x32x256xf32, #tpu.memory_space<vmem>>) attributes {dimension_semantics = [#tpu.dimension_semantics<parallel>], iteration_bounds = array<i64: 2>, scalar_prefetch = 0 : i64, scratch_operands = 0 : i64, tpu.core_type = #tpu.core_type<tc>, window_params = [{transform_indices = @transform_0, window_bounds = array<i64: 1, 48, 256>}, {pipeline_mode = #tpu.pipeline_mode<synchronous>, transform_indices = @transform_1, window_bounds = array<i64: 32, 48>}, {pipeline_mode = #tpu.pipeline_mode<synchronous>, transform_indices = @transform_2, window_bounds = array<i64: 2, 32, 1>}, {transform_indices = @transform_3, window_bounds = array<i64: 1, 32, 256>}]} {
    %c0 = arith.constant 0 : index
    %c0_0 = arith.constant 0 : index
    %0 = vector.load %arg2[%c0, %c0_0] : memref<32x48xbf16, #tpu.memory_space<vmem>>, vector<32x48xbf16>
    %c0_1 = arith.constant 0 : index
    %c0_2 = arith.constant 0 : index
    %c0_3 = arith.constant 0 : index
    %1 = vector.load %arg3[%c0_1, %c0_2, %c0_3] : memref<2x32x1xf32, #tpu.memory_space<vmem>>, vector<1x32x1xf32>
    %2 = vector.shape_cast %1 : vector<1x32x1xf32> to vector<32x1xf32>
    %c1 = arith.constant 1 : index
    %c0_4 = arith.constant 0 : index
    %c0_5 = arith.constant 0 : index
    %3 = vector.load %arg3[%c1, %c0_4, %c0_5] : memref<2x32x1xf32, #tpu.memory_space<vmem>>, vector<1x32x1xf32>
    %4 = vector.shape_cast %3 : vector<1x32x1xf32> to vector<32x1xf32>
    %c0_6 = arith.constant 0 : index
    %c0_7 = arith.constant 0 : index
    %c0_8 = arith.constant 0 : index
    %5 = vector.load %arg1[%c0_6, %c0_7, %c0_8] : memref<1x48x256xbf16, #tpu.memory_space<vmem>>, vector<1x48x256xbf16>
    %6 = vector.shape_cast %5 : vector<1x48x256xbf16> to vector<48x256xbf16>
    %cst = arith.constant dense<0.000000e+00> : vector<32x256xf32>
    %7 = tpu.matmul %0, %6, %cst {dimension_numbers = #tpu.dot_dimension_numbers<[1], [0], [0], [1], [0, 0, 1, 1], [], []>} : vector<32x48xbf16>, vector<48x256xbf16>, vector<32x256xf32> -> vector<32x256xf32>
    %cst_9 = arith.constant dense<0.000000e+00> : vector<32xf32>
    %8 = vector.multi_reduction <add>, %7, %cst_9 [1] : vector<32x256xf32> to vector<32xf32>
    %9 = vector.shape_cast %8 : vector<32xf32> to vector<32x1xf32>
    %10 = arith.mulf %7, %7 : vector<32x256xf32>
    %cst_10 = arith.constant dense<0.000000e+00> : vector<32xf32>
    %11 = vector.multi_reduction <add>, %10, %cst_10 [1] : vector<32x256xf32> to vector<32xf32>
    %12 = vector.shape_cast %11 : vector<32xf32> to vector<32x1xf32>
    %13 = vector.shape_cast %9 : vector<32x1xf32> to vector<16x2x1xf32>
    %cst_11 = arith.constant dense<0.000000e+00> : vector<16x1xf32>
    %14 = vector.multi_reduction <add>, %13, %cst_11 [1] : vector<16x2x1xf32> to vector<16x1xf32>
    %15 = vector.shape_cast %14 : vector<16x1xf32> to vector<16x1x1xf32>
    %16 = vector.shape_cast %12 : vector<32x1xf32> to vector<16x2x1xf32>
    %cst_12 = arith.constant dense<0.000000e+00> : vector<16x1xf32>
    %17 = vector.multi_reduction <add>, %16, %cst_12 [1] : vector<16x2x1xf32> to vector<16x1xf32>
    %18 = vector.shape_cast %17 : vector<16x1xf32> to vector<16x1x1xf32>
    %cst_13 = arith.constant 0.001953125 : f32
    %19 = vector.broadcast %cst_13 : f32 to vector<16x1x1xf32>
    %20 = arith.mulf %15, %19 : vector<16x1x1xf32>
    %cst_14 = arith.constant 0.001953125 : f32
    %21 = vector.broadcast %cst_14 : f32 to vector<16x1x1xf32>
    %22 = arith.mulf %18, %21 : vector<16x1x1xf32>
    %23 = arith.mulf %20, %20 : vector<16x1x1xf32>
    %24 = arith.subf %22, %23 : vector<16x1x1xf32>
    %cst_15 = arith.constant 0.000000e+00 : f32
    %25 = vector.broadcast %cst_15 : f32 to vector<16x1x1xf32>
    %26 = arith.maximumf %24, %25 : vector<16x1x1xf32>
    %cst_16 = arith.constant 9.99999997E-7 : f32
    %27 = vector.broadcast %cst_16 : f32 to vector<16x1x1xf32>
    %28 = arith.addf %26, %27 : vector<16x1x1xf32>
    %29 = math.rsqrt %28 : vector<16x1x1xf32>
    %30 = vector.shape_cast %20 : vector<16x1x1xf32> to vector<16x1x1xf32>
    %31 = vector.broadcast %30 : vector<16x1x1xf32> to vector<16x2x1xf32>
    %32 = vector.shape_cast %31 : vector<16x2x1xf32> to vector<32x1xf32>
    %33 = vector.shape_cast %29 : vector<16x1x1xf32> to vector<16x1x1xf32>
    %34 = vector.broadcast %33 : vector<16x1x1xf32> to vector<16x2x1xf32>
    %35 = vector.shape_cast %34 : vector<16x2x1xf32> to vector<32x1xf32>
    %36 = arith.mulf %35, %2 : vector<32x1xf32>
    %37 = arith.mulf %32, %36 : vector<32x1xf32>
    %38 = arith.subf %4, %37 : vector<32x1xf32>
    %39 = vector.broadcast %36 : vector<32x1xf32> to vector<32x256xf32>
    %40 = arith.mulf %7, %39 : vector<32x256xf32>
    %41 = vector.broadcast %38 : vector<32x1xf32> to vector<32x256xf32>
    %42 = arith.addf %40, %41 : vector<32x256xf32>
    %cst_17 = arith.constant 0.000000e+00 : f32
    %43 = vector.broadcast %cst_17 : f32 to vector<32x256xf32>
    %44 = arith.cmpf oge, %42, %43 : vector<32x256xf32>
    %cst_18 = arith.constant 0.00999999977 : f32
    %45 = vector.broadcast %cst_18 : f32 to vector<32x256xf32>
    %46 = arith.mulf %45, %42 : vector<32x256xf32>
    %47 = arith.select %44, %42, %46 : vector<32x256xi1>, vector<32x256xf32>
    %c0_19 = arith.constant 0 : index
    %c0_20 = arith.constant 0 : index
    %c0_21 = arith.constant 0 : index
    %48 = vector.load %arg4[%c0_19, %c0_20, %c0_21] : memref<1x32x256xf32, #tpu.memory_space<vmem>>, vector<1x32x256xf32>
    %49 = vector.shape_cast %48 : vector<1x32x256xf32> to vector<32x256xf32>
    %50 = vector.shape_cast %47 : vector<32x256xf32> to vector<1x32x256xf32>
    tpu.vector_store %arg4[%c0_19, %c0_20, %c0_21], %50 {strides = array<i32>} : memref<1x32x256xf32, #tpu.memory_space<vmem>>, vector<1x32x256xf32>,
    return
  }
  func.func @transform_0(%arg0: i32) -> (i32, i32, i32) {
    %c0_i32 = arith.constant 0 : i32
    %c0_i32_0 = arith.constant 0 : i32
    %c0_i32_1 = arith.constant 0 : i32
    return %arg0, %c0_i32, %c0_i32_0 : i32, i32, i32
  }
  func.func @transform_1(%arg0: i32) -> (i32, i32) {
    %c0_i32 = arith.constant 0 : i32
    %c0_i32_0 = arith.constant 0 : i32
    %c0_i32_1 = arith.constant 0 : i32
    return %c0_i32, %c0_i32_0 : i32, i32
  }
  func.func @transform_2(%arg0: i32) -> (i32, i32, i32) {
    %c0_i32 = arith.constant 0 : i32
    %c0_i32_0 = arith.constant 0 : i32
    %c0_i32_1 = arith.constant 0 : i32
    %c0_i32_2 = arith.constant 0 : i32
    return %c0_i32, %c0_i32_0, %c0_i32_1 : i32, i32, i32
  }
  func.func @transform_3(%arg0: i32) -> (i32, i32, i32) {
    %c0_i32 = arith.constant 0 : i32
    %c0_i32_0 = arith.constant 0 : i32
    %c0_i32_1 = arith.constant 0 : i32
    return %arg0, %c0_i32, %c0_i32_0 : i32, i32, i32
  }
}

</mosaic_0001>

<llo_original>
// kernel: tpu_custom_call.1
$region0: #{tpu_custom_call.1}
  #allocation0 [shape = 'u32[]', space=smem, size = 0x4, offset = 0x4, fixed_abs, tag = 'smem constant byte address 0x4 - core index']
  #allocation1 [shape = 'u32[144,128]{1,0:T(1,128)}', space=vmem, size = 0x12000, scoped, tag = 'internal scratch']
  %s0 = inlined_call_operand.hbm [shape: bf16[2,48,256], index: 0, kind: input, shape index: {}]
  %s1 = inlined_call_operand.vmem [shape: bf16[32,48], index: 1, kind: input, shape index: {}]
  %s2 = inlined_call_operand.vmem [shape: f32[2,32,1], index: 2, kind: input, shape index: {}]
  %s3 = inlined_call_operand.hbm [shape: f32[2,32,256], index: 3, kind: output, shape index: {}]
  %s4 = sld [smem:[#allocation0]]
  $region49: #{tpu_custom_call.1} parent=0
    _
  %s6 = ssub.s32 1, %s4
  %s7 = scalar_select 0, %s6, %s4
  $region1: #{tpu_custom_call.1} parent=0
    #allocation2 [shape = 'u8[49152]{0}', space=vmem, size = 0xc000, scoped, tag = 'input window, operand 0']
    #allocation3 [shape = 's32[2]{0}', space=sflag, size = 0x8, scoped, tag = 'scoped memory for tpu_custom_call.1']
    #allocation4 [shape = 's32[2]{0}', space=sflag, size = 0x8, scoped, tag = 'scoped memory for tpu_custom_call.1']
    #allocation5 [shape = 'u8[65536]{0}', space=vmem, size = 0x10000, scoped, tag = 'output window, operand 0']
    %8 = vsyncpa [#allocation3], 0
    %s9 = scalar_lea.sflag [#allocation3], 1
    %10 = vsyncpa %s9, 0
    %11 = vsyncpa [#allocation4], 0
    %s12 = scalar_lea.sflag [#allocation4], 1
    %13 = vsyncpa %s12, 0
    loop: start=0, step=1, limit=4
    $region2: #{tpu_custom_call.1} parent=1 // loop_pre_header
      _
    $region3: #{tpu_custom_call.1} parent=1 // loop_header
      %s15 = sphi 0, %s19
      %p16 = scmp.ge.s32.totalorder %s15, 4
      %s25 = sphi 0, %s27
      %s28 = sphi 0, %s25
      %s29 = sphi 0, %s28
      %s45 = sphi 0, %s29
      %s49 = sphi 0, %s49
      %s51 = sphi 0, %s49
      %s52 = sphi 0, %s51
      %s66 = sphi 0, %s52
      %s70 = sphi 0, %s70
      %s72 = sphi 0, %s70
      %s73 = sphi 0, %s72
      %s87 = sphi 0, %s73
      %s93 = sphi 0, %s95
      %s96 = sphi 0, %s93
      %s97 = sphi 0, %s96
      %s113 = sphi 0, %s97
    $region4: #{tpu_custom_call.1} parent=1 // loop_header_branch
      %18 = sbr.rel (%p16) target = $region8
    $region5: #{tpu_custom_call.1} parent=1 // loop_body
      %s20 = ssub.s32 %s15, 1
      %s21 = ssub.s32 %s15, 2
      %s22 = sadd.s32 %s15, 1
      %s23 = ssub.s32 %s15, %s22
      %p24 = scmp.eq.s32.totalorder %s23, 0
      %s26 = sadd.s32 %s25, 1
      %s27 = scalar_select %p24, %s25, %s26
      %p30 = pneg %p24
      %p31 = scmp.eq.s32.totalorder %s15, 1
      %p32 = por %p30, %p31
      %p33 = scmp.ne.s32.totalorder %s25, %s28
      %p34 = scmp.eq.s32.totalorder %s15, 0
      %p35 = por %p33, %p34
      %p36 = scmp.ne.s32.totalorder %s25, %s28
      %p37 = scmp.eq.s32.totalorder %s20, 1
      %p38 = por %p36, %p37
      %p39 = scmp.ne.s32.totalorder %s28, %s29
      %p40 = scmp.eq.s32.totalorder %s20, 0
      %p41 = por %p39, %p40
      %p42 = scmp.ne.s32.totalorder %s28, %s29
      %p43 = scmp.eq.s32.totalorder %s21, 1
      %p44 = por %p42, %p43
      %p46 = scmp.ne.s32.totalorder %s29, %s45
      %p47 = scmp.eq.s32.totalorder %s21, 0
      %p48 = por %p46, %p47
      %s50 = sadd.s32 %s49, 1
      %p53 = scmp.eq.s32.totalorder %s15, 1
      %p54 = scmp.ne.s32.totalorder %s49, %s51
      %p55 = scmp.eq.s32.totalorder %s15, 0
      %p56 = por %p54, %p55
      %p57 = scmp.ne.s32.totalorder %s49, %s51
      %p58 = scmp.eq.s32.totalorder %s20, 1
      %p59 = por %p57, %p58
      %p60 = scmp.ne.s32.totalorder %s51, %s52
      %p61 = scmp.eq.s32.totalorder %s20, 0
      %p62 = por %p60, %p61
      %p63 = scmp.ne.s32.totalorder %s51, %s52
      %p64 = scmp.eq.s32.totalorder %s21, 1
      %p65 = por %p63, %p64
      %p67 = scmp.ne.s32.totalorder %s52, %s66
      %p68 = scmp.eq.s32.totalorder %s21, 0
      %p69 = por %p67, %p68
      %s71 = sadd.s32 %s70, 1
      %p74 = scmp.eq.s32.totalorder %s15, 1
      %p75 = scmp.ne.s32.totalorder %s70, %s72
      %p76 = scmp.eq.s32.totalorder %s15, 0
      %p77 = por %p75, %p76
      %p78 = scmp.ne.s32.totalorder %s70, %s72
      %p79 = scmp.eq.s32.totalorder %s20, 1
      %p80 = por %p78, %p79
      %p81 = scmp.ne.s32.totalorder %s72, %s73
      %p82 = scmp.eq.s32.totalorder %s20, 0
      %p83 = por %p81, %p82
      %p84 = scmp.ne.s32.totalorder %s72, %s73
      %p85 = scmp.eq.s32.totalorder %s21, 1
      %p86 = por %p84, %p85
      %p88 = scmp.ne.s32.totalorder %s73, %s87
      %p89 = scmp.eq.s32.totalorder %s21, 0
      %p90 = por %p88, %p89
      %s91 = ssub.s32 %s15, %s22
      %p92 = scmp.eq.s32.totalorder %s91, 0
      %s94 = sadd.s32 %s93, 1
      %s95 = scalar_select %p92, %s93, %s94
      %p98 = pneg %p92
      %p99 = scmp.eq.s32.totalorder %s15, 1
      %p100 = por %p98, %p99
      %p101 = scmp.ne.s32.totalorder %s93, %s96
      %p102 = scmp.eq.s32.totalorder %s15, 0
      %p103 = por %p101, %p102
      %p104 = scmp.ne.s32.totalorder %s93, %s96
      %p105 = scmp.eq.s32.totalorder %s20, 1
      %p106 = por %p104, %p105
      %p107 = scmp.ne.s32.totalorder %s96, %s97
      %p108 = scmp.eq.s32.totalorder %s20, 0
      %p109 = por %p107, %p108
      %p110 = scmp.ne.s32.totalorder %s96, %s97
      %p111 = scmp.eq.s32.totalorder %s21, 1
      %p112 = por %p110, %p111
      %p114 = scmp.ne.s32.totalorder %s97, %s113
      %p115 = scmp.eq.s32.totalorder %s21, 0
      %p116 = por %p114, %p115
      %p117 = scmp.le.s32.totalorder 1, %s15
      %p118 = scmp.lt.s32.totalorder %s15, 3
      %p119 = pnand %p117, %p118
      %p120 = pneg %p119
      // Predicated region
      $region9: #{tpu_custom_call.1} parent=5 // pred_check
        _
      $region10: #{tpu_custom_call.1} parent=5 // pred_check_branch
        %122 = sbr.rel (%p119) target = $region12
      $region11: #{tpu_custom_call.1} parent=5 // pred_region
        %s123 = ssub.s32 %s15, 1
        // Predicated region
        $region13: #{tpu_custom_call.1} parent=11 // pred_check
          %p124 = pneg %p62
        $region14: #{tpu_custom_call.1} parent=11 // pred_check_branch
          %126 = sbr.rel (%p124) target = $region16
        $region15: #{tpu_custom_call.1} parent=11 // pred_region
          _
        $region16: #{tpu_custom_call.1} parent=11 // pred_fallthru
          _
        // Predicated region
        $region17: #{tpu_custom_call.1} parent=11 // pred_check
          %p127 = pneg %p83
        $region18: #{tpu_custom_call.1} parent=11 // pred_check_branch
          %129 = sbr.rel (%p127) target = $region20
        $region19: #{tpu_custom_call.1} parent=11 // pred_region
          _
        $region20: #{tpu_custom_call.1} parent=11 // pred_fallthru
          _
      $region12: #{tpu_custom_call.1} parent=5 // pred_fallthru
        _
      %p130 = scmp.lt.s32.totalorder %s15, 2
      // Predicated region
      $region21: #{tpu_custom_call.1} parent=5 // pred_check
        %p131 = pneg %p130
      $region22: #{tpu_custom_call.1} parent=5 // pred_check_branch
        %133 = sbr.rel (%p131) target = $region24
      $region23: #{tpu_custom_call.1} parent=5 // pred_region
        // Predicated region
        $region25: #{tpu_custom_call.1} parent=23 // pred_check
          %p134 = pneg %p35
        $region26: #{tpu_custom_call.1} parent=23 // pred_check_branch
          %136 = sbr.rel (%p134) target = $region28
        $region27: #{tpu_custom_call.1} parent=23 // pred_region
          %s137 = sand.u32 %s25, 1
          %s138 = scalar_lea.sflag [#allocation3], %s137
          %s139 = sand.u32 %s25, 1
          %s140 = smul.addr %s139, 48
          %s141 = scalar_lea.vmem [#allocation2], %s140
          %s143 = ssub.s32 768, 768
          %144 = vsyncadd %s138, %s143
          %s145 = smul.addr %s15, 12
          %s146 = smul.addr %s145, 64
          %s147 = scalar_lea.hbm %s0, %s146
          %s148 = sshll.u32 %s141, 4
          %s149 = int_to_ptr.vmem [resolvable:$true] %s148
          %154 = dma.hbm_to_vmem [thread:$0]  %s147, 768, %s149, %s138, 128, 128, 8
        $region28: #{tpu_custom_call.1} parent=23 // pred_fallthru
          _
      $region24: #{tpu_custom_call.1} parent=5 // pred_fallthru
        _
      %p155 = scmp.le.s32.totalorder 1, %s15
      %p156 = scmp.lt.s32.totalorder %s15, 3
      %p157 = pnand %p155, %p156
      %p158 = pneg %p157
      // Predicated region
      $region29: #{tpu_custom_call.1} parent=5 // pred_check
        _
      $region30: #{tpu_custom_call.1} parent=5 // pred_check_branch
        %160 = sbr.rel (%p157) target = $region32
      $region31: #{tpu_custom_call.1} parent=5 // pred_region
        %s161 = ssub.s32 %s15, 1
        %s162 = sand.u32 %s28, 1
        %s163 = scalar_lea.sflag [#allocation3], %s162
        %s164 = sand.u32 %s28, 1
        %s165 = smul.addr %s164, 48
        %s166 = scalar_lea.vmem [#allocation2], %s165
        // Predicated region
        $region33: #{tpu_custom_call.1} parent=31 // pred_check
          %p167 = pneg %p41
        $region34: #{tpu_custom_call.1} parent=31 // pred_check_branch
          %169 = sbr.rel (%p167) target = $region36
        $region35: #{tpu_custom_call.1} parent=31 // pred_region
          %170 = dma.done %s163, 768
        $region36: #{tpu_custom_call.1} parent=31 // pred_fallthru
          _
        %s171 = sand.u32 %s28, 1
        %s172 = scalar_lea.sflag [#allocation3], %s171
        %s173 = sand.u32 %s28, 1
        %s174 = smul.addr %s173, 48
        %s175 = scalar_lea.vmem [#allocation2], %s174
        %p176 = pneg %p41
        %p177 = pneg %p38
        %p178 = pneg %p62
        %p179 = pneg %p59
        %p180 = pneg %p83
        %p181 = pneg %p80
        %p182 = pneg %p109
        %p183 = pneg %p106
        %s184 = sand.u32 %s96, 1
        %s185 = scalar_lea.sflag [#allocation4], %s184
        %s186 = sand.u32 %s96, 1
        %s187 = smul.addr %s186, 64
        %s188 = scalar_lea.vmem [#allocation5], %s187
        %v190 = vld [vmem:[%s1] sm:$0xf]
        %v191 = vld [vmem:[%s1 + $0x4] sm:$0xf]
        %v192 = vld [vmem:[%s1 + $0x8] sm:$0xf]
        %v193 = vld [vmem:[%s1 + $0xc] sm:$0xf]
        %v194 = vld [vmem:[%s2] sm:$0xff]
        %v195 = vld [vmem:[%s2 + $0x8] sm:$0xff]
        %v196 = vld [vmem:[%s2 + $0x10] sm:$0xff]
        %v197 = vld [vmem:[%s2 + $0x18] sm:$0xff]
        %s198 = scalar_lea.vmem %s2, 32
        %v199 = vld [vmem:[%s198] sm:$0xff]
        %v200 = vld [vmem:[%s198 + $0x8] sm:$0xff]
        %v201 = vld [vmem:[%s198 + $0x10] sm:$0xff]
        %v202 = vld [vmem:[%s198 + $0x18] sm:$0xff]
        %v203 = vld [vmem:[%s166] sm:$0xff]
        %v204 = vld [vmem:[%s166 + $0x8] sm:$0xff]
        %v205 = vld [vmem:[%s166 + $0x10] sm:$0xff]
        %v206 = vld [vmem:[%s166 + $0x18] sm:$0xff]
        %v207 = vld [vmem:[%s166 + $0x20] sm:$0xff]
        %v208 = vld [vmem:[%s166 + $0x28] sm:$0xff]
        %v213 = vunpack.c.l.b16 %v190
        %v214 = vunpack.c.l.b16 %v191
        %v215 = vunpack.c.l.b16 %v192
        %v216 = vunpack.c.l.b16 %v193
        %v217 = vpack.c.b16 %v214, %v213
        %v218 = vpack.c.b16 %v216, %v215
        %v225 = vunpack.c.l.b16 %v203
        %v226 = vunpack.c.h.b16 %v203
        %v227 = vunpack.c.l.b16 %v204
        %v228 = vunpack.c.h.b16 %v204
        %v229 = vunpack.c.l.b16 %v205
        %v230 = vunpack.c.h.b16 %v205
        %v231 = vunpack.c.l.b16 %v206
        %v232 = vunpack.c.h.b16 %v206
        %v233 = vunpack.c.l.b16 %v207
        %v234 = vunpack.c.h.b16 %v207
        %v235 = vunpack.c.l.b16 %v208
        %v236 = vunpack.c.h.b16 %v208
        %v237 = vpack.c.b16 %v227, %v225
        %v238 = vpack.c.b16 %v228, %v226
        %v239 = vpack.c.b16 %v231, %v229
        %v240 = vpack.c.b16 %v232, %v230
        %v241 = vpack.c.b16 %v235, %v233
        %v242 = vpack.c.b16 %v236, %v234
        %vm249 = vcmask 392192
        %v251 = vsel %vm249, %v217, 0
        %v254 = vsel %vm249, %v218, 0
        %256 = vmatprep.subr.bf16.mxu0 0
        %257 = vmatpush1.bf16.msra.mxu0 0
        %258 = vmatprep.subr.bf16.mxu0 0
        %259 = vmatpush1.bf16.msra.mxu0 0
        %260 = vmatprep.subr.bf16.mxu0 0
        %261 = vmatpush1.bf16.msra.mxu0 0
        %262 = vmatprep.subr.bf16.mxu0 0
        %263 = vmatpush1.bf16.msra.mxu0 0
        %264 = vmatprep.subr.bf16.mxu0 0
        %265 = vmatpush1.bf16.msra.mxu0 0
        %266 = vmatprep.subr.bf16.mxu0 %v242
        %267 = vmatpush1.bf16.msra.mxu0 %v241
        %268 = vmatprep.subr.bf16.mxu0 %v240
        %269 = vmatpush1.bf16.msra.mxu0 %v239
        %270 = vmatprep.subr.bf16.mxu0 %v238
        %271 = vmatpush1.bf16.msra.mxu0 %v237
        %272 = vmatprep.subr.bf16.mxu0 0
        %273 = vmatpush2.bf16.msra.mxu0 0
        %274 = vmatprep.subr.bf16.mxu0 0
        %275 = vmatpush2.bf16.msra.mxu0 0
        %276 = vmatprep.subr.bf16.mxu0 0
        %277 = vmatpush2.bf16.msra.mxu0 0
        %278 = vmatprep.subr.bf16.mxu0 0
        %279 = vmatpush2.bf16.msra.mxu0 0
        %280 = vmatprep.subr.bf16.mxu0 0
        %281 = vmatpush2.bf16.msra.mxu0 0
        %282 = vmatprep.subr.bf16.mxu0 0
        %283 = vmatpush2.bf16.msra.mxu0 0
        %284 = vmatprep.subr.bf16.mxu0 0
        %285 = vmatpush2.bf16.msra.mxu0 0
        %286 = vmatprep.subr.bf16.mxu0 0
        %287 = vmatpush2.bf16.msra.mxu0 0
        %288 = vmatprep.mubr.bf16.mxu0 0
        %289 = vmatmul.mubr.bf16.gmra.mxu0 %v251
        %v290 = vpop.f32.mrf.mxu0
        %v291 = vadd.f32 0.0, %v290
        %v292 = vpop.f32.mrf.mxu0
        %v293 = vadd.f32 0.0, %v292
        %v294 = vpop.f32.mrf.mxu0
        %v295 = vadd.f32 0.0, %v294
        %v296 = vpop.f32.mrf.mxu0
        %v297 = vadd.f32 0.0, %v296
        %298 = vmatprep.mubr.bf16.mxu0 0
        %299 = vmatmul.mubr.bf16.gmra.mxu0 %v254
        %v300 = vpop.f32.mrf.mxu0
        %v301 = vadd.f32 0.0, %v300
        %v302 = vpop.f32.mrf.mxu0
        %v303 = vadd.f32 0.0, %v302
        %v304 = vpop.f32.mrf.mxu0
        %v305 = vadd.f32 0.0, %v304
        %v306 = vpop.f32.mrf.mxu0
        %v307 = vadd.f32 0.0, %v306
        %308 = vdwg.mxu0
        %v309 = vadd.f32 %v291, %v293
        %310 = vadd.xlane.f32.xlu0 %v309
        %v311 = vpop.xlane.xlu0 %310
        %v312 = vadd.f32 %v295, %v297
        %313 = vadd.xlane.f32.xlu0 %v312
        %v314 = vpop.xlane.xlu0 %313
        %v315 = vadd.f32 %v301, %v303
        %316 = vadd.xlane.f32.xlu0 %v315
        %v317 = vpop.xlane.xlu0 %316
        %v318 = vadd.f32 %v305, %v307
        %319 = vadd.xlane.f32.xlu0 %v318
        %v320 = vpop.xlane.xlu0 %319
        %v321 = vmul.f32 %v291, %v291
        %v322 = vmul.f32 %v293, %v293
        %v323 = vmul.f32 %v295, %v295
        %v324 = vmul.f32 %v297, %v297
        %v325 = vmul.f32 %v301, %v301
        %v326 = vmul.f32 %v303, %v303
        %v327 = vmul.f32 %v305, %v305
        %v328 = vmul.f32 %v307, %v307
        %v329 = vadd.f32 %v321, %v322
        %330 = vadd.xlane.f32.xlu0 %v329
        %v331 = vpop.xlane.xlu0 %330
        %v332 = vadd.f32 %v323, %v324
        %333 = vadd.xlane.f32.xlu0 %v332
        %v334 = vpop.xlane.xlu0 %333
        %v335 = vadd.f32 %v325, %v326
        %336 = vadd.xlane.f32.xlu0 %v335
        %v337 = vpop.xlane.xlu0 %336
        %v338 = vadd.f32 %v327, %v328
        %339 = vadd.xlane.f32.xlu0 %v338
        %v340 = vpop.xlane.xlu0 %339
        %v346 = vunpack.c.l.s4 269488144
        %v347 = vunpack.c.0.s8 %v346
        %v348 = vlaneseq
        %v349 = vshrl.u32 %v348, 7
        %v350 = vsub.s32 %v347, %v349
        %v351 = vrot.slane %v311, %v350
        %v353 = vunpack.c.l.s4 842150450
        %v354 = vunpack.c.0.s8 %v353
        %v355 = vlaneseq
        %v356 = vshrl.u32 %v355, 7
        %v357 = vsub.s32 %v354, %v356
        %v358 = vrot.slane %v311, %v357
        %v360 = vunpack.c.l.s4 1414812756
        %v361 = vunpack.c.0.s8 %v360
        %v362 = vlaneseq
        %v363 = vshrl.u32 %v362, 7
        %v364 = vsub.s32 %v361, %v363
        %v365 = vrot.slane %v311, %v364
        %v367 = vunpack.c.l.s4 1987475062
        %v368 = vunpack.c.0.s8 %v367
        %v369 = vlaneseq
        %v370 = vshrl.u32 %v369, 7
        %v371 = vsub.s32 %v368, %v370
        %v372 = vrot.slane %v311, %v371
        %v374 = vunpack.c.l.s4 269488144
        %v375 = vunpack.c.0.s8 %v374
        %v376 = vlaneseq
        %v377 = vshrl.u32 %v376, 7
        %v378 = vsub.s32 %v375, %v377
        %v379 = vrot.slane %v314, %v378
        %v381 = vunpack.c.l.s4 842150450
        %v382 = vunpack.c.0.s8 %v381
        %v383 = vlaneseq
        %v384 = vshrl.u32 %v383, 7
        %v385 = vsub.s32 %v382, %v384
        %v386 = vrot.slane %v314, %v385
        %v388 = vunpack.c.l.s4 1414812756
        %v389 = vunpack.c.0.s8 %v388
        %v390 = vlaneseq
        %v391 = vshrl.u32 %v390, 7
        %v392 = vsub.s32 %v389, %v391
        %v393 = vrot.slane %v314, %v392
        %v395 = vunpack.c.l.s4 1987475062
        %v396 = vunpack.c.0.s8 %v395
        %v397 = vlaneseq
        %v398 = vshrl.u32 %v397, 7
        %v399 = vsub.s32 %v396, %v398
        %v400 = vrot.slane %v314, %v399
        %v402 = vunpack.c.l.s4 269488144
        %v403 = vunpack.c.0.s8 %v402
        %v404 = vlaneseq
        %v405 = vshrl.u32 %v404, 7
        %v406 = vsub.s32 %v403, %v405
        %v407 = vrot.slane %v317, %v406
        %v409 = vunpack.c.l.s4 842150450
        %v410 = vunpack.c.0.s8 %v409
        %v411 = vlaneseq
        %v412 = vshrl.u32 %v411, 7
        %v413 = vsub.s32 %v410, %v412
        %v414 = vrot.slane %v317, %v413
        %v416 = vunpack.c.l.s4 1414812756
        %v417 = vunpack.c.0.s8 %v416
        %v418 = vlaneseq
        %v419 = vshrl.u32 %v418, 7
        %v420 = vsub.s32 %v417, %v419
        %v421 = vrot.slane %v317, %v420
        %v423 = vunpack.c.l.s4 1987475062
        %v424 = vunpack.c.0.s8 %v423
        %v425 = vlaneseq
        %v426 = vshrl.u32 %v425, 7
        %v427 = vsub.s32 %v424, %v426
        %v428 = vrot.slane %v317, %v427
        %v430 = vunpack.c.l.s4 269488144
        %v431 = vunpack.c.0.s8 %v430
        %v432 = vlaneseq
        %v433 = vshrl.u32 %v432, 7
        %v434 = vsub.s32 %v431, %v433
        %v435 = vrot.slane %v320, %v434
        %v437 = vunpack.c.l.s4 842150450
        %v438 = vunpack.c.0.s8 %v437
        %v439 = vlaneseq
        %v440 = vshrl.u32 %v439, 7
        %v441 = vsub.s32 %v438, %v440
        %v442 = vrot.slane %v320, %v441
        %v444 = vunpack.c.l.s4 1414812756
        %v445 = vunpack.c.0.s8 %v444
        %v446 = vlaneseq
        %v447 = vshrl.u32 %v446, 7
        %v448 = vsub.s32 %v445, %v447
        %v449 = vrot.slane %v320, %v448
        %v451 = vunpack.c.l.s4 1987475062
        %v452 = vunpack.c.0.s8 %v451
        %v453 = vlaneseq
        %v454 = vshrl.u32 %v453, 7
        %v455 = vsub.s32 %v452, %v454
        %v456 = vrot.slane %v320, %v455
        %vm473 = vcmask 1041408
        %v474 = vsel %vm473, %v351, 0.0
        %v475 = vrot.slane %v474, 4
        %v476 = vadd.f32 %v474, %v475
        %v477 = vrot.slane %v476, 2
        %v478 = vadd.f32 %v476, %v477
        %v479 = vrot.slane %v478, 1
        %v480 = vadd.f32 %v478, %v479
        %v481 = vsel %vm473, %v358, 0.0
        %v482 = vrot.slane %v481, 4
        %v483 = vadd.f32 %v481, %v482
        %v484 = vrot.slane %v483, 2
        %v485 = vadd.f32 %v483, %v484
        %v486 = vrot.slane %v485, 1
        %v487 = vadd.f32 %v485, %v486
        %v488 = vsel %vm473, %v365, 0.0
        %v489 = vrot.slane %v488, 4
        %v490 = vadd.f32 %v488, %v489
        %v491 = vrot.slane %v490, 2
        %v492 = vadd.f32 %v490, %v491
        %v493 = vrot.slane %v492, 1
        %v494 = vadd.f32 %v492, %v493
        %v495 = vsel %vm473, %v372, 0.0
        %v496 = vrot.slane %v495, 4
        %v497 = vadd.f32 %v495, %v496
        %v498 = vrot.slane %v497, 2
        %v499 = vadd.f32 %v497, %v498
        %v500 = vrot.slane %v499, 1
        %v501 = vadd.f32 %v499, %v500
        %v502 = vsel %vm473, %v379, 0.0
        %v503 = vrot.slane %v502, 4
        %v504 = vadd.f32 %v502, %v503
        %v505 = vrot.slane %v504, 2
        %v506 = vadd.f32 %v504, %v505
        %v507 = vrot.slane %v506, 1
        %v508 = vadd.f32 %v506, %v507
        %v509 = vsel %vm473, %v386, 0.0
        %v510 = vrot.slane %v509, 4
        %v511 = vadd.f32 %v509, %v510
        %v512 = vrot.slane %v511, 2
        %v513 = vadd.f32 %v511, %v512
        %v514 = vrot.slane %v513, 1
        %v515 = vadd.f32 %v513, %v514
        %v516 = vsel %vm473, %v393, 0.0
        %v517 = vrot.slane %v516, 4
        %v518 = vadd.f32 %v516, %v517
        %v519 = vrot.slane %v518, 2
        %v520 = vadd.f32 %v518, %v519
        %v521 = vrot.slane %v520, 1
        %v522 = vadd.f32 %v520, %v521
        %v523 = vsel %vm473, %v400, 0.0
        %v524 = vrot.slane %v523, 4
        %v525 = vadd.f32 %v523, %v524
        %v526 = vrot.slane %v525, 2
        %v527 = vadd.f32 %v525, %v526
        %v528 = vrot.slane %v527, 1
        %v529 = vadd.f32 %v527, %v528
        %v530 = vsel %vm473, %v407, 0.0
        %v531 = vrot.slane %v530, 4
        %v532 = vadd.f32 %v530, %v531
        %v533 = vrot.slane %v532, 2
        %v534 = vadd.f32 %v532, %v533
        %v535 = vrot.slane %v534, 1
        %v536 = vadd.f32 %v534, %v535
        %v537 = vsel %vm473, %v414, 0.0
        %v538 = vrot.slane %v537, 4
        %v539 = vadd.f32 %v537, %v538
        %v540 = vrot.slane %v539, 2
        %v541 = vadd.f32 %v539, %v540
        %v542 = vrot.slane %v541, 1
        %v543 = vadd.f32 %v541, %v542
        %v544 = vsel %vm473, %v421, 0.0
        %v545 = vrot.slane %v544, 4
        %v546 = vadd.f32 %v544, %v545
        %v547 = vrot.slane %v546, 2
        %v548 = vadd.f32 %v546, %v547
        %v549 = vrot.slane %v548, 1
        %v550 = vadd.f32 %v548, %v549
        %v551 = vsel %vm473, %v428, 0.0
        %v552 = vrot.slane %v551, 4
        %v553 = vadd.f32 %v551, %v552
        %v554 = vrot.slane %v553, 2
        %v555 = vadd.f32 %v553, %v554
        %v556 = vrot.slane %v555, 1
        %v557 = vadd.f32 %v555, %v556
        %v558 = vsel %vm473, %v435, 0.0
        %v559 = vrot.slane %v558, 4
        %v560 = vadd.f32 %v558, %v559
        %v561 = vrot.slane %v560, 2
        %v562 = vadd.f32 %v560, %v561
        %v563 = vrot.slane %v562, 1
        %v564 = vadd.f32 %v562, %v563
        %v565 = vsel %vm473, %v442, 0.0
        %v566 = vrot.slane %v565, 4
        %v567 = vadd.f32 %v565, %v566
        %v568 = vrot.slane %v567, 2
        %v569 = vadd.f32 %v567, %v568
        %v570 = vrot.slane %v569, 1
        %v571 = vadd.f32 %v569, %v570
        %v572 = vsel %vm473, %v449, 0.0
        %v573 = vrot.slane %v572, 4
        %v574 = vadd.f32 %v572, %v573
        %v575 = vrot.slane %v574, 2
        %v576 = vadd.f32 %v574, %v575
        %v577 = vrot.slane %v576, 1
        %v578 = vadd.f32 %v576, %v577
        %v579 = vsel %vm473, %v456, 0.0
        %v580 = vrot.slane %v579, 4
        %v581 = vadd.f32 %v579, %v580
        %v582 = vrot.slane %v581, 2
        %v583 = vadd.f32 %v581, %v582
        %v584 = vrot.slane %v583, 1
        %v585 = vadd.f32 %v583, %v584
        %v591 = vunpack.c.l.s4 269488144
        %v592 = vunpack.c.0.s8 %v591
        %v593 = vlaneseq
        %v594 = vshrl.u32 %v593, 7
        %v595 = vsub.s32 %v592, %v594
        %v596 = vrot.slane %v331, %v595
        %v598 = vunpack.c.l.s4 842150450
        %v599 = vunpack.c.0.s8 %v598
        %v600 = vlaneseq
        %v601 = vshrl.u32 %v600, 7
        %v602 = vsub.s32 %v599, %v601
        %v603 = vrot.slane %v331, %v602
        %v605 = vunpack.c.l.s4 1414812756
        %v606 = vunpack.c.0.s8 %v605
        %v607 = vlaneseq
        %v608 = vshrl.u32 %v607, 7
        %v609 = vsub.s32 %v606, %v608
        %v610 = vrot.slane %v331, %v609
        %v612 = vunpack.c.l.s4 1987475062
        %v613 = vunpack.c.0.s8 %v612
        %v614 = vlaneseq
        %v615 = vshrl.u32 %v614, 7
        %v616 = vsub.s32 %v613, %v615
        %v617 = vrot.slane %v331, %v616
        %v619 = vunpack.c.l.s4 269488144
        %v620 = vunpack.c.0.s8 %v619
        %v621 = vlaneseq
        %v622 = vshrl.u32 %v621, 7
        %v623 = vsub.s32 %v620, %v622
        %v624 = vrot.slane %v334, %v623
        %v626 = vunpack.c.l.s4 842150450
        %v627 = vunpack.c.0.s8 %v626
        %v628 = vlaneseq
        %v629 = vshrl.u32 %v628, 7
        %v630 = vsub.s32 %v627, %v629
        %v631 = vrot.slane %v334, %v630
        %v633 = vunpack.c.l.s4 1414812756
        %v634 = vunpack.c.0.s8 %v633
        %v635 = vlaneseq
        %v636 = vshrl.u32 %v635, 7
        %v637 = vsub.s32 %v634, %v636
        %v638 = vrot.slane %v334, %v637
        %v640 = vunpack.c.l.s4 1987475062
        %v641 = vunpack.c.0.s8 %v640
        %v642 = vlaneseq
        %v643 = vshrl.u32 %v642, 7
        %v644 = vsub.s32 %v641, %v643
        %v645 = vrot.slane %v334, %v644
        %v647 = vunpack.c.l.s4 269488144
        %v648 = vunpack.c.0.s8 %v647
        %v649 = vlaneseq
        %v650 = vshrl.u32 %v649, 7
        %v651 = vsub.s32 %v648, %v650
        %v652 = vrot.slane %v337, %v651
        %v654 = vunpack.c.l.s4 842150450
        %v655 = vunpack.c.0.s8 %v654
        %v656 = vlaneseq
        %v657 = vshrl.u32 %v656, 7
        %v658 = vsub.s32 %v655, %v657
        %v659 = vrot.slane %v337, %v658
        %v661 = vunpack.c.l.s4 1414812756
        %v662 = vunpack.c.0.s8 %v661
        %v663 = vlaneseq
        %v664 = vshrl.u32 %v663, 7
        %v665 = vsub.s32 %v662, %v664
        %v666 = vrot.slane %v337, %v665
        %v668 = vunpack.c.l.s4 1987475062
        %v669 = vunpack.c.0.s8 %v668
        %v670 = vlaneseq
        %v671 = vshrl.u32 %v670, 7
        %v672 = vsub.s32 %v669, %v671
        %v673 = vrot.slane %v337, %v672
        %v675 = vunpack.c.l.s4 269488144
        %v676 = vunpack.c.0.s8 %v675
        %v677 = vlaneseq
        %v678 = vshrl.u32 %v677, 7
        %v679 = vsub.s32 %v676, %v678
        %v680 = vrot.slane %v340, %v679
        %v682 = vunpack.c.l.s4 842150450
        %v683 = vunpack.c.0.s8 %v682
        %v684 = vlaneseq
        %v685 = vshrl.u32 %v684, 7
        %v686 = vsub.s32 %v683, %v685
        %v687 = vrot.slane %v340, %v686
        %v689 = vunpack.c.l.s4 1414812756
        %v690 = vunpack.c.0.s8 %v689
        %v691 = vlaneseq
        %v692 = vshrl.u32 %v691, 7
        %v693 = vsub.s32 %v690, %v692
        %v694 = vrot.slane %v340, %v693
        %v696 = vunpack.c.l.s4 1987475062
        %v697 = vunpack.c.0.s8 %v696
        %v698 = vlaneseq
        %v699 = vshrl.u32 %v698, 7
        %v700 = vsub.s32 %v697, %v699
        %v701 = vrot.slane %v340, %v700
        %v718 = vsel %vm473, %v596, 0.0
        %v719 = vrot.slane %v718, 4
        %v720 = vadd.f32 %v718, %v719
        %v721 = vrot.slane %v720, 2
        %v722 = vadd.f32 %v720, %v721
        %v723 = vrot.slane %v722, 1
        %v724 = vadd.f32 %v722, %v723
        %v725 = vsel %vm473, %v603, 0.0
        %v726 = vrot.slane %v725, 4
        %v727 = vadd.f32 %v725, %v726
        %v728 = vrot.slane %v727, 2
        %v729 = vadd.f32 %v727, %v728
        %v730 = vrot.slane %v729, 1
        %v731 = vadd.f32 %v729, %v730
        %v732 = vsel %vm473, %v610, 0.0
        %v733 = vrot.slane %v732, 4
        %v734 = vadd.f32 %v732, %v733
        %v735 = vrot.slane %v734, 2
        %v736 = vadd.f32 %v734, %v735
        %v737 = vrot.slane %v736, 1
        %v738 = vadd.f32 %v736, %v737
        %v739 = vsel %vm473, %v617, 0.0
        %v740 = vrot.slane %v739, 4
        %v741 = vadd.f32 %v739, %v740
        %v742 = vrot.slane %v741, 2
        %v743 = vadd.f32 %v741, %v742
        %v744 = vrot.slane %v743, 1
        %v745 = vadd.f32 %v743, %v744
        %v746 = vsel %vm473, %v624, 0.0
        %v747 = vrot.slane %v746, 4
        %v748 = vadd.f32 %v746, %v747
        %v749 = vrot.slane %v748, 2
        %v750 = vadd.f32 %v748, %v749
        %v751 = vrot.slane %v750, 1
        %v752 = vadd.f32 %v750, %v751
        %v753 = vsel %vm473, %v631, 0.0
        %v754 = vrot.slane %v753, 4
        %v755 = vadd.f32 %v753, %v754
        %v756 = vrot.slane %v755, 2
        %v757 = vadd.f32 %v755, %v756
        %v758 = vrot.slane %v757, 1
        %v759 = vadd.f32 %v757, %v758
        %v760 = vsel %vm473, %v638, 0.0
        %v761 = vrot.slane %v760, 4
        %v762 = vadd.f32 %v760, %v761
        %v763 = vrot.slane %v762, 2
        %v764 = vadd.f32 %v762, %v763
        %v765 = vrot.slane %v764, 1
        %v766 = vadd.f32 %v764, %v765
        %v767 = vsel %vm473, %v645, 0.0
        %v768 = vrot.slane %v767, 4
        %v769 = vadd.f32 %v767, %v768
        %v770 = vrot.slane %v769, 2
        %v771 = vadd.f32 %v769, %v770
        %v772 = vrot.slane %v771, 1
        %v773 = vadd.f32 %v771, %v772
        %v774 = vsel %vm473, %v652, 0.0
        %v775 = vrot.slane %v774, 4
        %v776 = vadd.f32 %v774, %v775
        %v777 = vrot.slane %v776, 2
        %v778 = vadd.f32 %v776, %v777
        %v779 = vrot.slane %v778, 1
        %v780 = vadd.f32 %v778, %v779
        %v781 = vsel %vm473, %v659, 0.0
        %v782 = vrot.slane %v781, 4
        %v783 = vadd.f32 %v781, %v782
        %v784 = vrot.slane %v783, 2
        %v785 = vadd.f32 %v783, %v784
        %v786 = vrot.slane %v785, 1
        %v787 = vadd.f32 %v785, %v786
        %v788 = vsel %vm473, %v666, 0.0
        %v789 = vrot.slane %v788, 4
        %v790 = vadd.f32 %v788, %v789
        %v791 = vrot.slane %v790, 2
        %v792 = vadd.f32 %v790, %v791
        %v793 = vrot.slane %v792, 1
        %v794 = vadd.f32 %v792, %v793
        %v795 = vsel %vm473, %v673, 0.0
        %v796 = vrot.slane %v795, 4
        %v797 = vadd.f32 %v795, %v796
        %v798 = vrot.slane %v797, 2
        %v799 = vadd.f32 %v797, %v798
        %v800 = vrot.slane %v799, 1
        %v801 = vadd.f32 %v799, %v800
        %v802 = vsel %vm473, %v680, 0.0
        %v803 = vrot.slane %v802, 4
        %v804 = vadd.f32 %v802, %v803
        %v805 = vrot.slane %v804, 2
        %v806 = vadd.f32 %v804, %v805
        %v807 = vrot.slane %v806, 1
        %v808 = vadd.f32 %v806, %v807
        %v809 = vsel %vm473, %v687, 0.0
        %v810 = vrot.slane %v809, 4
        %v811 = vadd.f32 %v809, %v810
        %v812 = vrot.slane %v811, 2
        %v813 = vadd.f32 %v811, %v812
        %v814 = vrot.slane %v813, 1
        %v815 = vadd.f32 %v813, %v814
        %v816 = vsel %vm473, %v694, 0.0
        %v817 = vrot.slane %v816, 4
        %v818 = vadd.f32 %v816, %v817
        %v819 = vrot.slane %v818, 2
        %v820 = vadd.f32 %v818, %v819
        %v821 = vrot.slane %v820, 1
        %v822 = vadd.f32 %v820, %v821
        %v823 = vsel %vm473, %v701, 0.0
        %v824 = vrot.slane %v823, 4
        %v825 = vadd.f32 %v823, %v824
        %v826 = vrot.slane %v825, 2
        %v827 = vadd.f32 %v825, %v826
        %v828 = vrot.slane %v827, 1
        %v829 = vadd.f32 %v827, %v828
        %v830 = vmul.f32 %v480, 0.001953125
        %v831 = vmul.f32 %v487, 0.001953125
        %v832 = vmul.f32 %v494, 0.001953125
        %v833 = vmul.f32 %v501, 0.001953125
        %v834 = vmul.f32 %v508, 0.001953125
        %v835 = vmul.f32 %v515, 0.001953125
        %v836 = vmul.f32 %v522, 0.001953125
        %v837 = vmul.f32 %v529, 0.001953125
        %v838 = vmul.f32 %v536, 0.001953125
        %v839 = vmul.f32 %v543, 0.001953125
        %v840 = vmul.f32 %v550, 0.001953125
        %v841 = vmul.f32 %v557, 0.001953125
        %v842 = vmul.f32 %v564, 0.001953125
        %v843 = vmul.f32 %v571, 0.001953125
        %v844 = vmul.f32 %v578, 0.001953125
        %v845 = vmul.f32 %v585, 0.001953125
        %v846 = vmul.f32 %v724, 0.001953125
        %v847 = vmul.f32 %v731, 0.001953125
        %v848 = vmul.f32 %v738, 0.001953125
        %v849 = vmul.f32 %v745, 0.001953125
        %v850 = vmul.f32 %v752, 0.001953125
        %v851 = vmul.f32 %v759, 0.001953125
        %v852 = vmul.f32 %v766, 0.001953125
        %v853 = vmul.f32 %v773, 0.001953125
        %v854 = vmul.f32 %v780, 0.001953125
        %v855 = vmul.f32 %v787, 0.001953125
        %v856 = vmul.f32 %v794, 0.001953125
        %v857 = vmul.f32 %v801, 0.001953125
        %v858 = vmul.f32 %v808, 0.001953125
        %v859 = vmul.f32 %v815, 0.001953125
        %v860 = vmul.f32 %v822, 0.001953125
        %v861 = vmul.f32 %v829, 0.001953125
        %v862 = vmul.f32 %v830, %v830
        %v863 = vmul.f32 %v831, %v831
        %v864 = vmul.f32 %v832, %v832
        %v865 = vmul.f32 %v833, %v833
        %v866 = vmul.f32 %v834, %v834
        %v867 = vmul.f32 %v835, %v835
        %v868 = vmul.f32 %v836, %v836
        %v869 = vmul.f32 %v837, %v837
        %v870 = vmul.f32 %v838, %v838
        %v871 = vmul.f32 %v839, %v839
        %v872 = vmul.f32 %v840, %v840
        %v873 = vmul.f32 %v841, %v841
        %v874 = vmul.f32 %v842, %v842
        %v875 = vmul.f32 %v843, %v843
        %v876 = vmul.f32 %v844, %v844
        %v877 = vmul.f32 %v845, %v845
        %v878 = vsub.f32 %v846, %v862
        %v879 = vsub.f32 %v847, %v863
        %v880 = vsub.f32 %v848, %v864
        %v881 = vsub.f32 %v849, %v865
        %v882 = vsub.f32 %v850, %v866
        %v883 = vsub.f32 %v851, %v867
        %v884 = vsub.f32 %v852, %v868
        %v885 = vsub.f32 %v853, %v869
        %v886 = vsub.f32 %v854, %v870
        %v887 = vsub.f32 %v855, %v871
        %v888 = vsub.f32 %v856, %v872
        %v889 = vsub.f32 %v857, %v873
        %v890 = vsub.f32 %v858, %v874
        %v891 = vsub.f32 %v859, %v875
        %v892 = vsub.f32 %v860, %v876
        %v893 = vsub.f32 %v861, %v877
        %v894 = vmax.f32 %v878, 0.0
        %v895 = vmax.f32 %v879, 0.0
        %v896 = vmax.f32 %v880, 0.0
        %v897 = vmax.f32 %v881, 0.0
        %v898 = vmax.f32 %v882, 0.0
        %v899 = vmax.f32 %v883, 0.0
        %v900 = vmax.f32 %v884, 0.0
        %v901 = vmax.f32 %v885, 0.0
        %v902 = vmax.f32 %v886, 0.0
        %v903 = vmax.f32 %v887, 0.0
        %v904 = vmax.f32 %v888, 0.0
        %v905 = vmax.f32 %v889, 0.0
        %v906 = vmax.f32 %v890, 0.0
        %v907 = vmax.f32 %v891, 0.0
        %v908 = vmax.f32 %v892, 0.0
        %v909 = vmax.f32 %v893, 0.0
        %v910 = vadd.f32 %v894, 1e-06
        %v911 = vadd.f32 %v895, 1e-06
        %v912 = vadd.f32 %v896, 1e-06
        %v913 = vadd.f32 %v897, 1e-06
        %v914 = vadd.f32 %v898, 1e-06
        %v915 = vadd.f32 %v899, 1e-06
        %v916 = vadd.f32 %v900, 1e-06
        %v917 = vadd.f32 %v901, 1e-06
        %v918 = vadd.f32 %v902, 1e-06
        %v919 = vadd.f32 %v903, 1e-06
        %v920 = vadd.f32 %v904, 1e-06
        %v921 = vadd.f32 %v905, 1e-06
        %v922 = vadd.f32 %v906, 1e-06
        %v923 = vadd.f32 %v907, 1e-06
        %v924 = vadd.f32 %v908, 1e-06
        %v925 = vadd.f32 %v909, 1e-06
        %v926 = vrsqrt.pop %v910
        %v927 = vrsqrt.pop %v911
        %v928 = vrsqrt.pop %v912
        %v929 = vrsqrt.pop %v913
        %v930 = vrsqrt.pop %v914
        %v931 = vrsqrt.pop %v915
        %v932 = vrsqrt.pop %v916
        %v933 = vrsqrt.pop %v917
        %v934 = vrsqrt.pop %v918
        %v935 = vrsqrt.pop %v919
        %v936 = vrsqrt.pop %v920
        %v937 = vrsqrt.pop %v921
        %v938 = vrsqrt.pop %v922
        %v939 = vrsqrt.pop %v923
        %v940 = vrsqrt.pop %v924
        %v941 = vrsqrt.pop %v925
        %v946 = vcombine.high %v194, %v194
        %v948 = vunpack.c.l.s4 1983009808
        %v949 = vunpack.c.0.s8 %v948
        %v950 = vlaneseq
        %v951 = vshrl.u32 %v950, 7
        %v952 = vsub.s32 %v949, %v951
        %v953 = vrot.slane %v194, %v952
        %v955 = vunpack.c.l.s4 1983009808
        %v956 = vunpack.c.0.s8 %v955
        %v957 = vlaneseq
        %v958 = vshrl.u32 %v957, 7
        %v959 = vsub.s32 %v956, %v958
        %v960 = vrot.slane %v946, %v959
        %v961 = vcombine.high %v953, %v953
        %v962 = vcombine.high %v960, %v960
        %v963 = vcombine.high %v195, %v195
        %v965 = vunpack.c.l.s4 1983009808
        %v966 = vunpack.c.0.s8 %v965
        %v967 = vlaneseq
        %v968 = vshrl.u32 %v967, 7
        %v969 = vsub.s32 %v966, %v968
        %v970 = vrot.slane %v195, %v969
        %v972 = vunpack.c.l.s4 1983009808
        %v973 = vunpack.c.0.s8 %v972
        %v974 = vlaneseq
        %v975 = vshrl.u32 %v974, 7
        %v976 = vsub.s32 %v973, %v975
        %v977 = vrot.slane %v963, %v976
        %v978 = vcombine.high %v970, %v970
        %v979 = vcombine.high %v977, %v977
        %v980 = vcombine.high %v196, %v196
        %v982 = vunpack.c.l.s4 1983009808
        %v983 = vunpack.c.0.s8 %v982
        %v984 = vlaneseq
        %v985 = vshrl.u32 %v984, 7
        %v986 = vsub.s32 %v983, %v985
        %v987 = vrot.slane %v196, %v986
        %v989 = vunpack.c.l.s4 1983009808
        %v990 = vunpack.c.0.s8 %v989
        %v991 = vlaneseq
        %v992 = vshrl.u32 %v991, 7
        %v993 = vsub.s32 %v990, %v992
        %v994 = vrot.slane %v980, %v993
        %v995 = vcombine.high %v987, %v987
        %v996 = vcombine.high %v994, %v994
        %v997 = vcombine.high %v197, %v197
        %v999 = vunpack.c.l.s4 1983009808
        %v1000 = vunpack.c.0.s8 %v999
        %v1001 = vlaneseq
        %v1002 = vshrl.u32 %v1001, 7
        %v1003 = vsub.s32 %v1000, %v1002
        %v1004 = vrot.slane %v197, %v1003
        %v1006 = vunpack.c.l.s4 1983009808
        %v1007 = vunpack.c.0.s8 %v1006
        %v1008 = vlaneseq
        %v1009 = vshrl.u32 %v1008, 7
        %v1010 = vsub.s32 %v1007, %v1009
        %v1011 = vrot.slane %v997, %v1010
        %v1012 = vcombine.high %v1004, %v1004
        %v1013 = vcombine.high %v1011, %v1011
        %v1030 = vmul.f32 %v926, %v953
        %v1031 = vmul.f32 %v927, %v961
        %v1032 = vmul.f32 %v928, %v960
        %v1033 = vmul.f32 %v929, %v962
        %v1034 = vmul.f32 %v930, %v970
        %v1035 = vmul.f32 %v931, %v978
        %v1036 = vmul.f32 %v932, %v977
        %v1037 = vmul.f32 %v933, %v979
        %v1038 = vmul.f32 %v934, %v987
        %v1039 = vmul.f32 %v935, %v995
        %v1040 = vmul.f32 %v936, %v994
        %v1041 = vmul.f32 %v937, %v996
        %v1042 = vmul.f32 %v938, %v1004
        %v1043 = vmul.f32 %v939, %v1012
        %v1044 = vmul.f32 %v940, %v1011
        %v1045 = vmul.f32 %v941, %v1013
        %v1046 = vmul.f32 %v830, %v1030
        %v1047 = vmul.f32 %v831, %v1031
        %v1048 = vmul.f32 %v832, %v1032
        %v1049 = vmul.f32 %v833, %v1033
        %v1050 = vmul.f32 %v834, %v1034
        %v1051 = vmul.f32 %v835, %v1035
        %v1052 = vmul.f32 %v836, %v1036
        %v1053 = vmul.f32 %v837, %v1037
        %v1054 = vmul.f32 %v838, %v1038
        %v1055 = vmul.f32 %v839, %v1039
        %v1056 = vmul.f32 %v840, %v1040
        %v1057 = vmul.f32 %v841, %v1041
        %v1058 = vmul.f32 %v842, %v1042
        %v1059 = vmul.f32 %v843, %v1043
        %v1060 = vmul.f32 %v844, %v1044
        %v1061 = vmul.f32 %v845, %v1045
        %v1078 = vcombine.low %v1046, %v1047
        %v1079 = vcombine.low %v1048, %v1049
        %v1081 = vunpack.c.l.s4 1983009808
        %v1082 = vunpack.c.0.s8 %v1081
        %v1083 = vlaneseq
        %v1084 = vshrl.u32 %v1083, 7
        %v1085 = vsub.s32 %v1082, %v1084
        %v1086 = vrot.slane %v1078, %v1085
        %v1088 = vunpack.c.l.s4 1983009808
        %v1089 = vunpack.c.0.s8 %v1088
        %v1090 = vlaneseq
        %v1091 = vshrl.u32 %v1090, 7
        %v1092 = vsub.s32 %v1089, %v1091
        %v1093 = vrot.slane %v1079, %v1092
        %v1094 = vcombine.low %v1086, %v1093
        %v1095 = vcombine.low %v1050, %v1051
        %v1096 = vcombine.low %v1052, %v1053
        %v1098 = vunpack.c.l.s4 1983009808
        %v1099 = vunpack.c.0.s8 %v1098
        %v1100 = vlaneseq
        %v1101 = vshrl.u32 %v1100, 7
        %v1102 = vsub.s32 %v1099, %v1101
        %v1103 = vrot.slane %v1095, %v1102
        %v1105 = vunpack.c.l.s4 1983009808
        %v1106 = vunpack.c.0.s8 %v1105
        %v1107 = vlaneseq
        %v1108 = vshrl.u32 %v1107, 7
        %v1109 = vsub.s32 %v1106, %v1108
        %v1110 = vrot.slane %v1096, %v1109
        %v1111 = vcombine.low %v1103, %v1110
        %v1112 = vcombine.low %v1054, %v1055
        %v1113 = vcombine.low %v1056, %v1057
        %v1115 = vunpack.c.l.s4 1983009808
        %v1116 = vunpack.c.0.s8 %v1115
        %v1117 = vlaneseq
        %v1118 = vshrl.u32 %v1117, 7
        %v1119 = vsub.s32 %v1116, %v1118
        %v1120 = vrot.slane %v1112, %v1119
        %v1122 = vunpack.c.l.s4 1983009808
        %v1123 = vunpack.c.0.s8 %v1122
        %v1124 = vlaneseq
        %v1125 = vshrl.u32 %v1124, 7
        %v1126 = vsub.s32 %v1123, %v1125
        %v1127 = vrot.slane %v1113, %v1126
        %v1128 = vcombine.low %v1120, %v1127
        %v1129 = vcombine.low %v1058, %v1059
        %v1130 = vcombine.low %v1060, %v1061
        %v1132 = vunpack.c.l.s4 1983009808
        %v1133 = vunpack.c.0.s8 %v1132
        %v1134 = vlaneseq
        %v1135 = vshrl.u32 %v1134, 7
        %v1136 = vsub.s32 %v1133, %v1135
        %v1137 = vrot.slane %v1129, %v1136
        %v1139 = vunpack.c.l.s4 1983009808
        %v1140 = vunpack.c.0.s8 %v1139
        %v1141 = vlaneseq
        %v1142 = vshrl.u32 %v1141, 7
        %v1143 = vsub.s32 %v1140, %v1142
        %v1144 = vrot.slane %v1130, %v1143
        %v1145 = vcombine.low %v1137, %v1144
        %v1150 = vsub.f32 %v199, %v1094
        %v1151 = vsub.f32 %v200, %v1111
        %v1152 = vsub.f32 %v201, %v1128
        %v1153 = vsub.f32 %v202, %v1145
        %1155 = vset.pattern.permute.xlu0 0
        %1156 = vperm.xlu0 %1155, %v1030
        %v1157 = vpop.permute.xlu0 %1156
        %v1160 = vunpack.c.l.s4 269488144
        %v1161 = vunpack.c.0.s8 %v1160
        %v1162 = vlaneseq
        %v1163 = vshrl.u32 %v1162, 7
        %v1164 = vsub.s32 %v1161, %v1163
        %v1165 = vrot.slane %v1157, %v1164
        %1167 = vset.pattern.permute.xlu0 0
        %1168 = vperm.xlu0 %1167, %v1031
        %v1169 = vpop.permute.xlu0 %1168
        %v1172 = vunpack.c.l.s4 269488144
        %v1173 = vunpack.c.0.s8 %v1172
        %v1174 = vlaneseq
        %v1175 = vshrl.u32 %v1174, 7
        %v1176 = vsub.s32 %v1173, %v1175
        %v1177 = vrot.slane %v1169, %v1176
        %1179 = vset.pattern.permute.xlu0 0
        %1180 = vperm.xlu0 %1179, %v1032
        %v1181 = vpop.permute.xlu0 %1180
        %v1184 = vunpack.c.l.s4 269488144
        %v1185 = vunpack.c.0.s8 %v1184
        %v1186 = vlaneseq
        %v1187 = vshrl.u32 %v1186, 7
        %v1188 = vsub.s32 %v1185, %v1187
        %v1189 = vrot.slane %v1181, %v1188
        %1191 = vset.pattern.permute.xlu0 0
        %1192 = vperm.xlu0 %1191, %v1033
        %v1193 = vpop.permute.xlu0 %1192
        %v1196 = vunpack.c.l.s4 269488144
        %v1197 = vunpack.c.0.s8 %v1196
        %v1198 = vlaneseq
        %v1199 = vshrl.u32 %v1198, 7
        %v1200 = vsub.s32 %v1197, %v1199
        %v1201 = vrot.slane %v1193, %v1200
        %1203 = vset.pattern.permute.xlu0 0
        %1204 = vperm.xlu0 %1203, %v1034
        %v1205 = vpop.permute.xlu0 %1204
        %v1208 = vunpack.c.l.s4 269488144
        %v1209 = vunpack.c.0.s8 %v1208
        %v1210 = vlaneseq
        %v1211 = vshrl.u32 %v1210, 7
        %v1212 = vsub.s32 %v1209, %v1211
        %v1213 = vrot.slane %v1205, %v1212
        %1215 = vset.pattern.permute.xlu0 0
        %1216 = vperm.xlu0 %1215, %v1035
        %v1217 = vpop.permute.xlu0 %1216
        %v1220 = vunpack.c.l.s4 269488144
        %v1221 = vunpack.c.0.s8 %v1220
        %v1222 = vlaneseq
        %v1223 = vshrl.u32 %v1222, 7
        %v1224 = vsub.s32 %v1221, %v1223
        %v1225 = vrot.slane %v1217, %v1224
        %1227 = vset.pattern.permute.xlu0 0
        %1228 = vperm.xlu0 %1227, %v1036
        %v1229 = vpop.permute.xlu0 %1228
        %v1232 = vunpack.c.l.s4 269488144
        %v1233 = vunpack.c.0.s8 %v1232
        %v1234 = vlaneseq
        %v1235 = vshrl.u32 %v1234, 7
        %v1236 = vsub.s32 %v1233, %v1235
        %v1237 = vrot.slane %v1229, %v1236
        %1239 = vset.pattern.permute.xlu0 0
        %1240 = vperm.xlu0 %1239, %v1037
        %v1241 = vpop.permute.xlu0 %1240
        %v1244 = vunpack.c.l.s4 269488144
        %v1245 = vunpack.c.0.s8 %v1244
        %v1246 = vlaneseq
        %v1247 = vshrl.u32 %v1246, 7
        %v1248 = vsub.s32 %v1245, %v1247
        %v1249 = vrot.slane %v1241, %v1248
        %1251 = vset.pattern.permute.xlu0 0
        %1252 = vperm.xlu0 %1251, %v1038
        %v1253 = vpop.permute.xlu0 %1252
        %v1256 = vunpack.c.l.s4 269488144
        %v1257 = vunpack.c.0.s8 %v1256
        %v1258 = vlaneseq
        %v1259 = vshrl.u32 %v1258, 7
        %v1260 = vsub.s32 %v1257, %v1259
        %v1261 = vrot.slane %v1253, %v1260
        %1263 = vset.pattern.permute.xlu0 0
        %1264 = vperm.xlu0 %1263, %v1039
        %v1265 = vpop.permute.xlu0 %1264
        %v1268 = vunpack.c.l.s4 269488144
        %v1269 = vunpack.c.0.s8 %v1268
        %v1270 = vlaneseq
        %v1271 = vshrl.u32 %v1270, 7
        %v1272 = vsub.s32 %v1269, %v1271
        %v1273 = vrot.slane %v1265, %v1272
        %1275 = vset.pattern.permute.xlu0 0
        %1276 = vperm.xlu0 %1275, %v1040
        %v1277 = vpop.permute.xlu0 %1276
        %v1280 = vunpack.c.l.s4 269488144
        %v1281 = vunpack.c.0.s8 %v1280
        %v1282 = vlaneseq
        %v1283 = vshrl.u32 %v1282, 7
        %v1284 = vsub.s32 %v1281, %v1283
        %v1285 = vrot.slane %v1277, %v1284
        %1287 = vset.pattern.permute.xlu0 0
        %1288 = vperm.xlu0 %1287, %v1041
        %v1289 = vpop.permute.xlu0 %1288
        %v1292 = vunpack.c.l.s4 269488144
        %v1293 = vunpack.c.0.s8 %v1292
        %v1294 = vlaneseq
        %v1295 = vshrl.u32 %v1294, 7
        %v1296 = vsub.s32 %v1293, %v1295
        %v1297 = vrot.slane %v1289, %v1296
        %1299 = vset.pattern.permute.xlu0 0
        %1300 = vperm.xlu0 %1299, %v1042
        %v1301 = vpop.permute.xlu0 %1300
        %v1304 = vunpack.c.l.s4 269488144
        %v1305 = vunpack.c.0.s8 %v1304
        %v1306 = vlaneseq
        %v1307 = vshrl.u32 %v1306, 7
        %v1308 = vsub.s32 %v1305, %v1307
        %v1309 = vrot.slane %v1301, %v1308
        %1311 = vset.pattern.permute.xlu0 0
        %1312 = vperm.xlu0 %1311, %v1043
        %v1313 = vpop.permute.xlu0 %1312
        %v1316 = vunpack.c.l.s4 269488144
        %v1317 = vunpack.c.0.s8 %v1316
        %v1318 = vlaneseq
        %v1319 = vshrl.u32 %v1318, 7
        %v1320 = vsub.s32 %v1317, %v1319
        %v1321 = vrot.slane %v1313, %v1320
        %1323 = vset.pattern.permute.xlu0 0
        %1324 = vperm.xlu0 %1323, %v1044
        %v1325 = vpop.permute.xlu0 %1324
        %v1328 = vunpack.c.l.s4 269488144
        %v1329 = vunpack.c.0.s8 %v1328
        %v1330 = vlaneseq
        %v1331 = vshrl.u32 %v1330, 7
        %v1332 = vsub.s32 %v1329, %v1331
        %v1333 = vrot.slane %v1325, %v1332
        %1335 = vset.pattern.permute.xlu0 0
        %1336 = vperm.xlu0 %1335, %v1045
        %v1337 = vpop.permute.xlu0 %1336
        %v1340 = vunpack.c.l.s4 269488144
        %v1341 = vunpack.c.0.s8 %v1340
        %v1342 = vlaneseq
        %v1343 = vshrl.u32 %v1342, 7
        %v1344 = vsub.s32 %v1341, %v1343
        %v1345 = vrot.slane %v1337, %v1344
        %v1362 = vcombine.low %v1165, %v1177
        %v1363 = vcombine.low %v1189, %v1201
        %v1365 = vunpack.c.l.s4 1983009808
        %v1366 = vunpack.c.0.s8 %v1365
        %v1367 = vlaneseq
        %v1368 = vshrl.u32 %v1367, 7
        %v1369 = vsub.s32 %v1366, %v1368
        %v1370 = vrot.slane %v1362, %v1369
        %v1372 = vunpack.c.l.s4 1983009808
        %v1373 = vunpack.c.0.s8 %v1372
        %v1374 = vlaneseq
        %v1375 = vshrl.u32 %v1374, 7
        %v1376 = vsub.s32 %v1373, %v1375
        %v1377 = vrot.slane %v1363, %v1376
        %v1378 = vcombine.low %v1370, %v1377
        %v1379 = vcombine.high %v1370, %v1377
        %v1380 = vcombine.low %v1213, %v1225
        %v1381 = vcombine.low %v1237, %v1249
        %v1383 = vunpack.c.l.s4 1983009808
        %v1384 = vunpack.c.0.s8 %v1383
        %v1385 = vlaneseq
        %v1386 = vshrl.u32 %v1385, 7
        %v1387 = vsub.s32 %v1384, %v1386
        %v1388 = vrot.slane %v1380, %v1387
        %v1390 = vunpack.c.l.s4 1983009808
        %v1391 = vunpack.c.0.s8 %v1390
        %v1392 = vlaneseq
        %v1393 = vshrl.u32 %v1392, 7
        %v1394 = vsub.s32 %v1391, %v1393
        %v1395 = vrot.slane %v1381, %v1394
        %v1396 = vcombine.low %v1388, %v1395
        %v1397 = vcombine.high %v1388, %v1395
        %v1398 = vcombine.low %v1261, %v1273
        %v1399 = vcombine.low %v1285, %v1297
        %v1401 = vunpack.c.l.s4 1983009808
        %v1402 = vunpack.c.0.s8 %v1401
        %v1403 = vlaneseq
        %v1404 = vshrl.u32 %v1403, 7
        %v1405 = vsub.s32 %v1402, %v1404
        %v1406 = vrot.slane %v1398, %v1405
        %v1408 = vunpack.c.l.s4 1983009808
        %v1409 = vunpack.c.0.s8 %v1408
        %v1410 = vlaneseq
        %v1411 = vshrl.u32 %v1410, 7
        %v1412 = vsub.s32 %v1409, %v1411
        %v1413 = vrot.slane %v1399, %v1412
        %v1414 = vcombine.low %v1406, %v1413
        %v1415 = vcombine.high %v1406, %v1413
        %v1416 = vcombine.low %v1309, %v1321
        %v1417 = vcombine.low %v1333, %v1345
        %v1419 = vunpack.c.l.s4 1983009808
        %v1420 = vunpack.c.0.s8 %v1419
        %v1421 = vlaneseq
        %v1422 = vshrl.u32 %v1421, 7
        %v1423 = vsub.s32 %v1420, %v1422
        %v1424 = vrot.slane %v1416, %v1423
        %v1426 = vunpack.c.l.s4 1983009808
        %v1427 = vunpack.c.0.s8 %v1426
        %v1428 = vlaneseq
        %v1429 = vshrl.u32 %v1428, 7
        %v1430 = vsub.s32 %v1427, %v1429
        %v1431 = vrot.slane %v1417, %v1430
        %v1432 = vcombine.low %v1424, %v1431
        %v1433 = vcombine.high %v1424, %v1431
        %v1442 = vmul.f32 %v291, %v1378
        %v1443 = vmul.f32 %v293, %v1379
        %v1444 = vmul.f32 %v295, %v1396
        %v1445 = vmul.f32 %v297, %v1397
        %v1446 = vmul.f32 %v301, %v1414
        %v1447 = vmul.f32 %v303, %v1415
        %v1448 = vmul.f32 %v305, %v1432
        %v1449 = vmul.f32 %v307, %v1433
        %1451 = vset.pattern.permute.xlu0 0
        %1452 = vperm.xlu0 %1451, %v1150
        %v1453 = vpop.permute.xlu0 %1452
        %1456 = vset.pattern.permute.xlu0 0
        %1457 = vperm.xlu0 %1456, %v1151
        %v1458 = vpop.permute.xlu0 %1457
        %1461 = vset.pattern.permute.xlu0 0
        %1462 = vperm.xlu0 %1461, %v1152
        %v1463 = vpop.permute.xlu0 %1462
        %1466 = vset.pattern.permute.xlu0 0
        %1467 = vperm.xlu0 %1466, %v1153
        %v1468 = vpop.permute.xlu0 %1467
        %v1470 = vadd.f32 %v1442, %v1453
        %v1471 = vadd.f32 %v1443, %v1453
        %v1472 = vadd.f32 %v1444, %v1458
        %v1473 = vadd.f32 %v1445, %v1458
        %v1474 = vadd.f32 %v1446, %v1463
        %v1475 = vadd.f32 %v1447, %v1463
        %v1476 = vadd.f32 %v1448, %v1468
        %v1477 = vadd.f32 %v1449, %v1468
        %vm1478 = vcmp.ge.f32.partialorder %v1470, 0.0
        %vm1479 = vcmp.ge.f32.partialorder %v1471, 0.0
        %vm1480 = vcmp.ge.f32.partialorder %v1472, 0.0
        %vm1481 = vcmp.ge.f32.partialorder %v1473, 0.0
        %vm1482 = vcmp.ge.f32.partialorder %v1474, 0.0
        %vm1483 = vcmp.ge.f32.partialorder %v1475, 0.0
        %vm1484 = vcmp.ge.f32.partialorder %v1476, 0.0
        %vm1485 = vcmp.ge.f32.partialorder %v1477, 0.0
        %v1486 = vmul.f32 %v1470, 0.01
        %v1487 = vmul.f32 %v1471, 0.01
        %v1488 = vmul.f32 %v1472, 0.01
        %v1489 = vmul.f32 %v1473, 0.01
        %v1490 = vmul.f32 %v1474, 0.01
        %v1491 = vmul.f32 %v1475, 0.01
        %v1492 = vmul.f32 %v1476, 0.01
        %v1493 = vmul.f32 %v1477, 0.01
        %v1494 = vsel %vm1478, %v1470, %v1486
        %v1495 = vsel %vm1479, %v1471, %v1487
        %v1496 = vsel %vm1480, %v1472, %v1488
        %v1497 = vsel %vm1481, %v1473, %v1489
        %v1498 = vsel %vm1482, %v1474, %v1490
        %v1499 = vsel %vm1483, %v1475, %v1491
        %v1500 = vsel %vm1484, %v1476, %v1492
        %v1501 = vsel %vm1485, %v1477, %v1493
        %1502 = vst [vmem:[%s188] sm:$0xff] %v1494
        %1503 = vst [vmem:[%s188 + $0x8] sm:$0xff] %v1495
        %1504 = vst [vmem:[%s188 + $0x10] sm:$0xff] %v1496
        %1505 = vst [vmem:[%s188 + $0x18] sm:$0xff] %v1497
        %1506 = vst [vmem:[%s188 + $0x20] sm:$0xff] %v1498
        %1507 = vst [vmem:[%s188 + $0x28] sm:$0xff] %v1499
        %1508 = vst [vmem:[%s188 + $0x30] sm:$0xff] %v1500
        %1509 = vst [vmem:[%s188 + $0x38] sm:$0xff] %v1501
        %s1510 = sand.u32 %s96, 1
        %s1511 = scalar_lea.sflag [#allocation4], %s1510
        %s1512 = sand.u32 %s96, 1
        %s1513 = smul.addr %s1512, 64
        %s1514 = scalar_lea.vmem [#allocation5], %s1513
        // Predicated region
        $region37: #{tpu_custom_call.1} parent=31 // pred_check
          %p1515 = pneg %p106
        $region38: #{tpu_custom_call.1} parent=31 // pred_check_branch
          %1517 = sbr.rel (%p1515) target = $region40
        $region39: #{tpu_custom_call.1} parent=31 // pred_region
          %s1519 = ssub.s32 1024, 1024
          %1520 = vsyncadd %s1511, %s1519
          %s1521 = smul.addr %s20, 8
          %s1522 = smul.addr %s1521, 128
          %s1523 = scalar_lea.hbm %s3, %s1522
          %s1524 = sshll.u32 %s1514, 4
          %s1525 = int_to_ptr.vmem [resolvable:$true] %s1524
          %1530 = dma.vmem_to_hbm [thread:$0]  %s1525, 1024, %s1523, %s1511, 256, 256, 16
        $region40: #{tpu_custom_call.1} parent=31 // pred_fallthru
          _
      $region32: #{tpu_custom_call.1} parent=5 // pred_fallthru
        _
      %p1531 = scmp.le.s32.totalorder 2, %s15
      // Predicated region
      $region41: #{tpu_custom_call.1} parent=5 // pred_check
        %p1532 = pneg %p1531
      $region42: #{tpu_custom_call.1} parent=5 // pred_check_branch
        %1534 = sbr.rel (%p1532) target = $region44
      $region43: #{tpu_custom_call.1} parent=5 // pred_region
        %s1535 = ssub.s32 %s15, 2
        // Predicated region
        $region45: #{tpu_custom_call.1} parent=43 // pred_check
          %p1536 = pneg %p112
        $region46: #{tpu_custom_call.1} parent=43 // pred_check_branch
          %1538 = sbr.rel (%p1536) target = $region48
        $region47: #{tpu_custom_call.1} parent=43 // pred_region
          %s1539 = sand.u32 %s97, 1
          %s1540 = scalar_lea.sflag [#allocation4], %s1539
          %s1541 = sand.u32 %s97, 1
          %s1542 = smul.addr %s1541, 64
          %s1543 = scalar_lea.vmem [#allocation5], %s1542
          %1544 = dma.done %s1540, 1024
        $region48: #{tpu_custom_call.1} parent=43 // pred_fallthru
          _
      $region44: #{tpu_custom_call.1} parent=5 // pred_fallthru
        _
    $region6: #{tpu_custom_call.1} parent=1 // loop_footer
      %s19 = sadd.s32 1, %s15
    $region7: #{tpu_custom_call.1} parent=1 // loop_footer_branch
      %14 = sbr.rel target = $region3
    $region8: #{tpu_custom_call.1} parent=1 // loop_exit
      _
    %1545 = vsyncpa [#allocation3], 1
    %s1546 = scalar_lea.sflag [#allocation3], 1
    %1547 = vsyncpa %s1546, 1
    %1548 = vsyncpa [#allocation4], 1
    %s1549 = scalar_lea.sflag [#allocation4], 1
    %1550 = vsyncpa %s1549, 1

</llo_original>
